<compile_context>
chip_gen: v6e
topology: v6e:2x2x1
jax: 0.10.0
libtpu: 0.0.40
codegen_flags: <defaults>
</compile_context>

<pallas_src>
import functools

import jax
import jax.numpy as jnp
from jax import lax
from jax.experimental import pallas as pl
from jax.experimental.pallas import tpu as pltpu


# ----------------------------- generation-aware budgets -----------------------------

@functools.lru_cache(maxsize=1)
def _tpu_budgets():
    """VMEM scoped budget, target per-block bytes, and a 2-TensorCore heuristic."""
    vmem_cap = None
    try:
        info = pltpu.get_tpu_info()
        for name in ("vmem_capacity_bytes", "vmem_size_bytes", "vmem_bytes"):
            cap = getattr(info, name, None)
            if cap:
                vmem_cap = int(cap)
                break
    except Exception:
        vmem_cap = None
    if vmem_cap is None:
        # Unknown generation: conservative sizing that is safe everywhere.
        return {"vmem_limit": 32 * 2**20, "block_bytes": 4 * 2**20, "two_cores": False}
    if vmem_cap <= 64 * 2**20:
        # v7x-like: 64 MiB VMEM per TC, 2 TCs/chip, ~3.2 TB/s HBM.
        return {"vmem_limit": 44 * 2**20, "block_bytes": 5 * 2**20, "two_cores": True}
    # v5e / v6e: 128 MiB VMEM, single TensorCore.
    return {"vmem_limit": 96 * 2**20, "block_bytes": 10 * 2**20, "two_cores": False}


def _sublane(dtype):
    return 8 if jnp.dtype(dtype).itemsize >= 4 else 16


# ------------------- InstanceNorm: fused row-wise normalize (no affine) -------------------

def _rownorm_kernel(x_ref, o_ref, *, eps, inv_l):
    # x_ref/o_ref: (TR, L); each row is one (n, c) group.  Centered variance.
    x = x_ref[...].astype(jnp.float32)
    mean = jnp.sum(x, axis=-1, keepdims=True) * inv_l
    xc = x - mean
    var = jnp.sum(xc * xc, axis=-1, keepdims=True) * inv_l     # biased var (PyTorch norm path)
    o_ref[...] = (xc * lax.rsqrt(var + eps)).astype(o_ref.dtype)


def _pick_row_tile(R, L, dtype, block_bytes, two_cores):
    sub = _sublane(dtype)
    item = jnp.dtype(dtype).itemsize
    rows = (block_bytes // max(L * item, 1)) // sub * sub       # VMEM-budget-driven, no row cap
    rows = max(sub, rows)
    if two_cores and R >= 2 * sub:
        # Guarantee >= 2 parallel grid steps so both TensorCores get work (v7x).
        rows = min(rows, max(sub, (R // 2) // sub * sub))
    if rows >= R:
        return R
    return rows


def _instance_norm_fused(x, eps, budgets):
    N, C, H, W = x.shape
    R, L = N * C, H * W
    xr = x.reshape(R, L)
    tr = _pick_row_tile(R, L, x.dtype, budgets["block_bytes"], budgets["two_cores"])
    out = pl.pallas_call(
        functools.partial(_rownorm_kernel, eps=eps, inv_l=1.0 / L),
        out_shape=jax.ShapeDtypeStruct((R, L), x.dtype),
        grid=(pl.cdiv(R, tr),),
        in_specs=[pl.BlockSpec((tr, L), lambda r: (r, 0))],
        out_specs=pl.BlockSpec((tr, L), lambda r: (r, 0)),
        compiler_params=pltpu.CompilerParams(
            dimension_semantics=("parallel",),
            vmem_limit_bytes=budgets["vmem_limit"]),
    )(xr)
    return out.reshape(N, C, H, W)


# --------------- InstanceNorm fallback: split-L two-pass (huge H*W per row) ---------------

def _in_stats_kernel(x_ref, sum_ref, sq_ref, *, L, tl):
    li = pl.program_id(1)

    @pl.when(li == 0)
    def _():
        sum_ref[...] = jnp.zeros_like(sum_ref)
        sq_ref[...] = jnp.zeros_like(sq_ref)

    x = x_ref[...].astype(jnp.float32)                          # (tr, tl)
    col = li * tl + lax.broadcasted_iota(jnp.int32, x.shape, 1)
    x = jnp.where(col < L, x, 0.0)                              # masked remainder tile
    sum_ref[...] += jnp.sum(x, axis=1, keepdims=True)
    sq_ref[...] += jnp.sum(x * x, axis=1, keepdims=True)


def _in_apply_kernel(x_ref, sum_ref, sq_ref, o_ref, *, eps, inv_l):
    mean = sum_ref[...] * inv_l                                  # (tr, 1)
    var = jnp.maximum(sq_ref[...] * inv_l - mean * mean, 0.0)
    inv = lax.rsqrt(var + eps)
    x = x_ref[...].astype(jnp.float32)
    o_ref[...] = ((x - mean) * inv).astype(o_ref.dtype)


def _instance_norm_split(x, eps, budgets):
    N, C, H, W = x.shape
    R, L = N * C, H * W
    xr = x.reshape(R, L)
    sub = _sublane(x.dtype)
    item = jnp.dtype(x.dtype).itemsize
    block_bytes = budgets["block_bytes"]

    tr = sub if R >= sub else R
    if budgets["two_cores"] and R >= 2 * sub:
        tr = min(tr, max(sub, (R // 2) // sub * sub))
    # Lane-dense L tile sized to the block budget; remainder handled by masking.
    tl = max(128, (block_bytes // max(tr * item, 1)) // 128 * 128)
    tl = min(tl, pl.cdiv(L, 128) * 128)
    num_r = pl.cdiv(R, tr)
    num_l = pl.cdiv(L, tl)

    sums, sumsq = pl.pallas_call(
        functools.partial(_in_stats_kernel, L=L, tl=tl),
        out_shape=(jax.ShapeDtypeStruct((R, 1), jnp.float32),
                   jax.ShapeDtypeStruct((R, 1), jnp.float32)),
        grid=(num_r, num_l),
        in_specs=[pl.BlockSpec((tr, tl), lambda r, l: (r, l))],
        out_specs=(pl.BlockSpec((tr, 1), lambda r, l: (r, 0)),
                   pl.BlockSpec((tr, 1), lambda r, l: (r, 0))),
        compiler_params=pltpu.CompilerParams(
            dimension_semantics=("parallel", "arbitrary"),
            vmem_limit_bytes=budgets["vmem_limit"]),
    )(xr)

    out = pl.pallas_call(
        functools.partial(_in_apply_kernel, eps=eps, inv_l=1.0 / L),
        out_shape=jax.ShapeDtypeStruct((R, L), x.dtype),
        grid=(num_r, num_l),
        in_specs=[pl.BlockSpec((tr, tl), lambda r, l: (r, l)),
                  pl.BlockSpec((tr, 1), lambda r, l: (r, 0)),
                  pl.BlockSpec((tr, 1), lambda r, l: (r, 0))],
        out_specs=pl.BlockSpec((tr, tl), lambda r, l: (r, l)),
        compiler_params=pltpu.CompilerParams(
            dimension_semantics=("parallel", "parallel"),
            vmem_limit_bytes=budgets["vmem_limit"]),
    )(xr, sums, sumsq)
    return out.reshape(N, C, H, W)


def _instance_norm(x, eps):
    budgets = _tpu_budgets()
    _, _, H, W = x.shape
    L = H * W
    sub = _sublane(x.dtype)
    item = jnp.dtype(x.dtype).itemsize
    if sub * L * item > budgets["block_bytes"]:
        return _instance_norm_split(x, eps, budgets)
    return _instance_norm_fused(x, eps, budgets)


# -------------------------- BatchNorm: fused single-pass kernel --------------------------

def _bn_fused_kernel(x_ref, g_ref, b_ref, o_ref, *, eps, inv_count):
    # x_ref/o_ref: (N, Ct, HW); g_ref/b_ref: (1, Ct, 1).  Centered variance (no
    # catastrophic cancellation), scale/shift and write all fused -> 2x|x| HBM traffic.
    x = x_ref[...].astype(jnp.float32)
    mean = jnp.sum(jnp.sum(x, axis=2, keepdims=True), axis=0, keepdims=True) * inv_count
    xc = x - mean
    var = jnp.sum(jnp.sum(xc * xc, axis=2, keepdims=True), axis=0, keepdims=True) * inv_count
    scale = g_ref[...].astype(jnp.float32) * lax.rsqrt(var + eps)
    shift = b_ref[...].astype(jnp.float32)
    o_ref[...] = (xc * scale + shift).astype(o_ref.dtype)


def _batch_norm_fused(x3, gamma, beta, eps, c_tile, budgets):
    N, C, HW = x3.shape
    g3 = gamma.reshape(1, C, 1).astype(jnp.float32)
    b3 = beta.reshape(1, C, 1).astype(jnp.float32)
    num_c = C // c_tile
    return pl.pallas_call(
        functools.partial(_bn_fused_kernel, eps=eps, inv_count=1.0 / (N * HW)),
        out_shape=jax.ShapeDtypeStruct((N, C, HW), x3.dtype),
        grid=(num_c,),
        in_specs=[pl.BlockSpec((N, c_tile, HW), lambda c: (0, c, 0)),
                  pl.BlockSpec((1, c_tile, 1), lambda c: (0, c, 0)),
                  pl.BlockSpec((1, c_tile, 1), lambda c: (0, c, 0))],
        out_specs=pl.BlockSpec((N, c_tile, HW), lambda c: (0, c, 0)),
        compiler_params=pltpu.CompilerParams(
            dimension_semantics=("parallel",),
            vmem_limit_bytes=budgets["vmem_limit"]),
    )(x3, g3, b3)


# ----------------------- BatchNorm fallback: two-pass NCHW kernels -----------------------

def _bn_stats_kernel(x_ref, sum_ref, sq_ref, *, HW, hw_tile, masked):
    hi = pl.program_id(2)

    @pl.when(jnp.logical_and(pl.program_id(1) == 0, hi == 0))
    def _():
        sum_ref[...] = jnp.zeros_like(sum_ref)
        sq_ref[...] = jnp.zeros_like(sq_ref)

    x = x_ref[...].astype(jnp.float32)                           # (Ct, HWt)
    if masked:
        col = hi * hw_tile + lax.broadcasted_iota(jnp.int32, x.shape, 1)
        x = jnp.where(col < HW, x, 0.0)
    sum_ref[...] += jnp.sum(x, axis=1, keepdims=True)
    sq_ref[...] += jnp.sum(x * x, axis=1, keepdims=True)


def _bn_apply_kernel(x_ref, sum_ref, sq_ref, g_ref, b_ref, o_ref, *, eps, inv_count):
    # Per-channel scale/shift epilogue fused into the apply kernel (no XLA micro-ops).
    mean = sum_ref[...] * inv_count                              # (Ct, 1)
    var = jnp.maximum(sq_ref[...] * inv_count - mean * mean, 0.0)
    scale = g_ref[...] * lax.rsqrt(var + eps)
    shift = b_ref[...] - mean * scale
    x = x_ref[...].astype(jnp.float32)                           # (Ct, HWt)
    o_ref[...] = (x * scale + shift).astype(o_ref.dtype)


def _c_tile_candidates(C):
    cands = {C}
    if C % 8 == 0:
        cands.update(d for d in range(8, C, 8) if C % d == 0)
    return sorted(cands, reverse=True)


def _batch_norm_two_pass(x3, gamma, beta, eps, budgets):
    N, C, HW = x3.shape
    item = jnp.dtype(x3.dtype).itemsize
    block_bytes = budgets["block_bytes"]
    g2 = jnp.asarray(gamma).reshape(C, 1).astype(jnp.float32)
    b2 = jnp.asarray(beta).reshape(C, 1).astype(jnp.float32)

    cands = _c_tile_candidates(C)
    fits = [t for t in cands if t * 128 * item <= block_bytes] or [cands[-1]]
    c_tile = fits[0]
    if budgets["two_cores"]:
        two = [t for t in fits if C // t >= 2]
        if two:
            c_tile = two[0]
    # Lane-dense HW tile sized to the budget; masked remainder if HW % 128 != 0.
    hw_tile = max(128, (block_bytes // max(c_tile * item, 1)) // 128 * 128)
    hw_tile = min(hw_tile, pl.cdiv(HW, 128) * 128)
    num_c = C // c_tile
    num_hw = pl.cdiv(HW, hw_tile)
    masked = (HW % hw_tile) != 0

    sums, sumsq = pl.pallas_call(
        functools.partial(_bn_stats_kernel, HW=HW, hw_tile=hw_tile, masked=masked),
        out_shape=(jax.ShapeDtypeStruct((C, 1), jnp.float32),
                   jax.ShapeDtypeStruct((C, 1), jnp.float32)),
        grid=(num_c, N, num_hw),
        in_specs=[pl.BlockSpec((None, c_tile, hw_tile), lambda c, n, h: (n, c, h))],
        out_specs=(pl.BlockSpec((c_tile, 1), lambda c, n, h: (c, 0)),
                   pl.BlockSpec((c_tile, 1), lambda c, n, h: (c, 0))),
        compiler_params=pltpu.CompilerParams(
            dimension_semantics=("parallel", "arbitrary", "arbitrary"),
            vmem_limit_bytes=budgets["vmem_limit"]),
    )(x3)

    out = pl.pallas_call(
        functools.partial(_bn_apply_kernel, eps=eps, inv_count=1.0 / (N * HW)),
        out_shape=jax.ShapeDtypeStruct((N, C, HW), x3.dtype),
        grid=(num_c, N, num_hw),
        in_specs=[pl.BlockSpec((None, c_tile, hw_tile), lambda c, n, h: (n, c, h)),
                  pl.BlockSpec((c_tile, 1), lambda c, n, h: (c, 0)),
                  pl.BlockSpec((c_tile, 1), lambda c, n, h: (c, 0)),
                  pl.BlockSpec((c_tile, 1), lambda c, n, h: (c, 0)),
                  pl.BlockSpec((c_tile, 1), lambda c, n, h: (c, 0))],
        out_specs=pl.BlockSpec((None, c_tile, hw_tile), lambda c, n, h: (n, c, h)),
        compiler_params=pltpu.CompilerParams(
            dimension_semantics=("parallel", "parallel", "parallel"),
            vmem_limit_bytes=budgets["vmem_limit"]),
    )(x3, sums, sumsq, g2, b2)
    return out


def _batch_norm(x, gamma, beta, eps):
    budgets = _tpu_budgets()
    N, C, H, W = x.shape
    HW = H * W
    item = jnp.dtype(x.dtype).itemsize
    x3 = x.reshape(N, C, HW)

    cands = _c_tile_candidates(C)
    fits = [t for t in cands if N * t * HW * item <= budgets["block_bytes"]]
    if budgets["two_cores"]:
        two = [t for t in fits if C // t >= 2]
        if two:
            fits = two
    if fits:
        y = _batch_norm_fused(x3, gamma, beta, eps, fits[0], budgets)
    else:
        y = _batch_norm_two_pass(x3, gamma, beta, eps, budgets)
    return y.reshape(N, C, H, W)


# ----------------------------------- public forward -----------------------------------

def norm_layer_forward(x, norm_type, gamma=None, beta=None, eps=1e-5):
    """Forward of NormLayer. x is NCHW. norm_type in {"batch", "instance", "none"}.

    "batch": BatchNorm2d training-mode forward (batch stats over N,H,W, affine gamma/beta).
    "instance": InstanceNorm2d defaults (per-sample per-channel stats over H,W, no affine).
    "none": identity.
    """
    if norm_type == "none":
        return x
    if norm_type == "batch":
        # TODO(synk): running_mean/running_var momentum buffer updates (training state)
        # are not modeled; normalization output matches.
        return _batch_norm(x, gamma, beta, eps)
    if norm_type == "instance":
        return _instance_norm(x, eps)
    raise ValueError(f"unknown norm_type: {norm_type}")


# ----------------------------------- reference & test -----------------------------------

def _reference(x, norm_type, gamma, beta, eps=1e-5):
    if norm_type == "none":
        return x
    if norm_type == "batch":
        mean = jnp.mean(x, axis=(0, 2, 3), keepdims=True)
        var = jnp.var(x, axis=(0, 2, 3), keepdims=True)
        y = (x - mean) / jnp.sqrt(var + eps)
        return y * gamma.reshape(1, -1, 1, 1) + beta.reshape(1, -1, 1, 1)
    if norm_type == "instance":
        mean = jnp.mean(x, axis=(2, 3), keepdims=True)
        var = jnp.var(x, axis=(2, 3), keepdims=True)
        return (x - mean) / jnp.sqrt(var + eps)
    raise ValueError(norm_type)


if __name__ == "__main__":
    key = jax.random.PRNGKey(0)
    k0, k1, k2, k3, k4 = jax.random.split(key, 5)
    ok = True

    def close(a, b):
        return bool(jnp.allclose(a, b, atol=1e-4, rtol=1e-4))

    # 1) Spec-sized case: all three norm types.
    N, C, H, W = 2, 4, 16, 16
    x = jax.random.normal(k0, (N, C, H, W), dtype=jnp.float32)
    gamma = jnp.ones((C,), jnp.float32)    # nn.BatchNorm2d default init
    beta = jnp.zeros((C,), jnp.float32)
    for nt in ("batch", "instance", "none"):
        out = jax.block_until_ready(norm_layer_forward(x, nt, gamma, beta))
        if not close(out, _reference(x, nt, gamma, beta)):
            ok = False
            print(f"MISMATCH norm_type={nt} shape={(N, C, H, W)}")

    # 2) Fused single-pass BatchNorm with more channels and non-trivial affine.
    x2 = jax.random.normal(k1, (3, 48, 14, 14), dtype=jnp.float32)
    g2 = 1.0 + 0.1 * jax.random.normal(k2, (48,), dtype=jnp.float32)
    b2 = 0.1 * jax.random.normal(k3, (48,), dtype=jnp.float32)
    out2 = jax.block_until_ready(norm_layer_forward(x2, "batch", g2, b2))
    if not close(out2, _reference(x2, "batch", g2, b2)):
        ok = False
        print("MISMATCH norm_type=batch (fused case)")

    # 3) InstanceNorm with many rows (possibly multiple parallel row tiles on v7x).
    x3 = jax.random.normal(k4, (4, 272, 9, 9), dtype=jnp.float32)
    out3 = jax.block_until_ready(norm_layer_forward(x3, "instance"))
    if not close(out3, _reference(x3, "instance", None, None)):
        ok = False
        print("MISMATCH norm_type=instance (fused case)")

    # 4) Forced fallback paths with a tiny block budget: exercises the two-pass BN,
    #    split-L InstanceNorm, lane-dense HW/L tiling and masked remainder tiles.
    tiny = {"vmem_limit": 32 * 2**20, "block_bytes": 8 * 1024, "two_cores": True}

    x4 = jax.random.normal(k1, (2, 16, 20, 13), dtype=jnp.float32)     # HW=260
    g4 = 1.0 + 0.1 * jax.random.normal(k2, (16,), dtype=jnp.float32)
    b4 = 0.1 * jax.random.normal(k3, (16,), dtype=jnp.float32)
    out4 = _batch_norm_two_pass(x4.reshape(2, 16, 260), g4, b4, 1e-5, tiny)
    out4 = jax.block_until_ready(out4.reshape(2, 16, 20, 13))
    if not close(out4, _reference(x4, "batch", g4, b4)):
        ok = False
        print("MISMATCH norm_type=batch (two-pass fallback)")

    x5 = jax.random.normal(k4, (2, 8, 17, 19), dtype=jnp.float32)      # L=323
    out5 = jax.block_until_ready(_instance_norm_split(x5, 1e-5, tiny))
    if not close(out5, _reference(x5, "instance", None, None)):
        ok = False
        print("MISMATCH norm_type=instance (split-L fallback)")

    if ok:
        print("KERNEL_OK")
</pallas_src>

<mosaic_0001>
module attributes {stable_mosaic.version = 11 : i64} {
  func.func @_bn_fused_kernel(%arg0: i32, %arg1: memref<2x4x256xf32, #tpu.memory_space<vmem>>, %arg2: memref<1x4x1xf32, #tpu.memory_space<vmem>>, %arg3: memref<1x4x1xf32, #tpu.memory_space<vmem>>, %arg4: memref<2x4x256xf32, #tpu.memory_space<vmem>>) attributes {dimension_semantics = [#tpu.dimension_semantics<parallel>], iteration_bounds = array<i64: 1>, scalar_prefetch = 0 : i64, scratch_operands = 0 : i64, tpu.core_type = #tpu.core_type<tc>, window_params = [{transform_indices = @transform_0, window_bounds = array<i64: 2, 4, 256>}, {transform_indices = @transform_1, window_bounds = array<i64: 1, 4, 1>}, {transform_indices = @transform_2, window_bounds = array<i64: 1, 4, 1>}, {transform_indices = @transform_3, window_bounds = array<i64: 2, 4, 256>}]} {
    %c0 = arith.constant 0 : index
    %c0_0 = arith.constant 0 : index
    %c0_1 = arith.constant 0 : index
    %0 = vector.load %arg1[%c0, %c0_0, %c0_1] : memref<2x4x256xf32, #tpu.memory_space<vmem>>, vector<2x4x256xf32>
    %cst = arith.constant dense<0.000000e+00> : vector<2x4xf32>
    %1 = vector.multi_reduction <add>, %0, %cst [2] : vector<2x4x256xf32> to vector<2x4xf32>
    %2 = vector.shape_cast %1 : vector<2x4xf32> to vector<2x4x1xf32>
    %cst_2 = arith.constant dense<0.000000e+00> : vector<4x1xf32>
    %3 = vector.multi_reduction <add>, %2, %cst_2 [0] : vector<2x4x1xf32> to vector<4x1xf32>
    %4 = vector.shape_cast %3 : vector<4x1xf32> to vector<1x4x1xf32>
    %cst_3 = arith.constant 0.001953125 : f32
    %5 = vector.broadcast %cst_3 : f32 to vector<1x4x1xf32>
    %6 = arith.mulf %4, %5 : vector<1x4x1xf32>
    %7 = vector.broadcast %6 : vector<1x4x1xf32> to vector<2x4x256xf32>
    %8 = arith.subf %0, %7 : vector<2x4x256xf32>
    %9 = arith.mulf %8, %8 : vector<2x4x256xf32>
    %cst_4 = arith.constant dense<0.000000e+00> : vector<2x4xf32>
    %10 = vector.multi_reduction <add>, %9, %cst_4 [2] : vector<2x4x256xf32> to vector<2x4xf32>
    %11 = vector.shape_cast %10 : vector<2x4xf32> to vector<2x4x1xf32>
    %cst_5 = arith.constant dense<0.000000e+00> : vector<4x1xf32>
    %12 = vector.multi_reduction <add>, %11, %cst_5 [0] : vector<2x4x1xf32> to vector<4x1xf32>
    %13 = vector.shape_cast %12 : vector<4x1xf32> to vector<1x4x1xf32>
    %cst_6 = arith.constant 0.001953125 : f32
    %14 = vector.broadcast %cst_6 : f32 to vector<1x4x1xf32>
    %15 = arith.mulf %13, %14 : vector<1x4x1xf32>
    %c0_7 = arith.constant 0 : index
    %c0_8 = arith.constant 0 : index
    %c0_9 = arith.constant 0 : index
    %16 = vector.load %arg2[%c0_7, %c0_8, %c0_9] : memref<1x4x1xf32, #tpu.memory_space<vmem>>, vector<1x4x1xf32>
    %cst_10 = arith.constant 9.99999974E-6 : f32
    %17 = vector.broadcast %cst_10 : f32 to vector<1x4x1xf32>
    %18 = arith.addf %15, %17 : vector<1x4x1xf32>
    %19 = math.rsqrt %18 : vector<1x4x1xf32>
    %20 = arith.mulf %16, %19 : vector<1x4x1xf32>
    %c0_11 = arith.constant 0 : index
    %c0_12 = arith.constant 0 : index
    %c0_13 = arith.constant 0 : index
    %21 = vector.load %arg3[%c0_11, %c0_12, %c0_13] : memref<1x4x1xf32, #tpu.memory_space<vmem>>, vector<1x4x1xf32>
    %22 = vector.broadcast %20 : vector<1x4x1xf32> to vector<2x4x256xf32>
    %23 = arith.mulf %8, %22 : vector<2x4x256xf32>
    %24 = vector.broadcast %21 : vector<1x4x1xf32> to vector<2x4x256xf32>
    %25 = arith.addf %23, %24 : vector<2x4x256xf32>
    %c0_14 = arith.constant 0 : index
    %c0_15 = arith.constant 0 : index
    %c0_16 = arith.constant 0 : index
    %26 = vector.load %arg4[%c0_14, %c0_15, %c0_16] : memref<2x4x256xf32, #tpu.memory_space<vmem>>, vector<2x4x256xf32>
    tpu.vector_store %arg4[%c0_14, %c0_15, %c0_16], %25 {strides = array<i32>} : memref<2x4x256xf32, #tpu.memory_space<vmem>>, vector<2x4x256xf32>,
    return
  }
  func.func @transform_0(%arg0: i32) -> (i32, i32, i32) {
    %c0_i32 = arith.constant 0 : i32
    %c0_i32_0 = arith.constant 0 : i32
    %c0_i32_1 = arith.constant 0 : i32
    return %c0_i32, %arg0, %c0_i32_0 : i32, i32, i32
  }
  func.func @transform_1(%arg0: i32) -> (i32, i32, i32) {
    %c0_i32 = arith.constant 0 : i32
    %c0_i32_0 = arith.constant 0 : i32
    %c0_i32_1 = arith.constant 0 : i32
    return %c0_i32, %arg0, %c0_i32_0 : i32, i32, i32
  }
  func.func @transform_2(%arg0: i32) -> (i32, i32, i32) {
    %c0_i32 = arith.constant 0 : i32
    %c0_i32_0 = arith.constant 0 : i32
    %c0_i32_1 = arith.constant 0 : i32
    return %c0_i32, %arg0, %c0_i32_0 : i32, i32, i32
  }
  func.func @transform_3(%arg0: i32) -> (i32, i32, i32) {
    %c0_i32 = arith.constant 0 : i32
    %c0_i32_0 = arith.constant 0 : i32
    %c0_i32_1 = arith.constant 0 : i32
    return %c0_i32, %arg0, %c0_i32_0 : i32, i32, i32
  }
}

</mosaic_0001>

<llo_original>
// kernel: tpu_custom_call.1
$region0: #{tpu_custom_call.1}
  #allocation0 [shape = 'u32[]', space=smem, size = 0x4, offset = 0x4, fixed_abs, tag = 'smem constant byte address 0x4 - core index']
  #allocation1 [shape = 'u32[144,128]{1,0:T(1,128)}', space=vmem, size = 0x12000, scoped, tag = 'internal scratch']
  %s0 = inlined_call_operand.hbm [shape: f32[2,4,256], index: 0, kind: input, shape index: {}]
  %s1 = inlined_call_operand.vmem [shape: f32[1,4,1], index: 1, kind: input, shape index: {}]
  %s2 = inlined_call_operand.vmem [shape: f32[1,4,1], index: 2, kind: input, shape index: {}]
  %s3 = inlined_call_operand.hbm [shape: f32[2,4,256], index: 3, kind: output, shape index: {}]
  %s4 = sld [smem:[#allocation0]]
  $region26: #{tpu_custom_call.1} parent=0
    _
  %s6 = ssub.s32 1, %s4
  %s7 = scalar_select 0, %s6, %s4
  $region1: #{tpu_custom_call.1} parent=0
    #allocation2 [shape = 'u8[8192]{0}', space=vmem, size = 0x2000, scoped, tag = 'input window, operand 0, single buffered']
    #allocation3 [shape = 's32[1]{0}', space=sflag, size = 0x4, scoped, tag = 'scoped memory for tpu_custom_call.1']
    #allocation4 [shape = 's32[1]{0}', space=sflag, size = 0x4, scoped, tag = 'scoped memory for tpu_custom_call.1']
    #allocation5 [shape = 'u8[8192]{0}', space=vmem, size = 0x2000, scoped, tag = 'output window, operand 0, single buffered']
    %8 = vsyncpa [#allocation3], 0
    %9 = vsyncpa [#allocation4], 0
    // Predicated region
    $region2: #{tpu_custom_call.1} parent=1 // pred_check
      _
    $region3: #{tpu_custom_call.1} parent=1 // pred_check_branch
      %11 = sbr.rel (0) target = $region5
    $region4: #{tpu_custom_call.1} parent=1 // pred_region
      %s13 = ssub.s32 256, 256
      %14 = vsyncadd [#allocation3], %s13
      %s15 = sshll.u32 [#allocation2], 4
      %s16 = int_to_ptr.vmem [resolvable:$true] %s15
      %21 = dma.hbm_to_vmem [thread:$0]  %s0, 256, %s16, [#allocation3], 128, 128, 8
    $region5: #{tpu_custom_call.1} parent=1 // pred_fallthru
      _
    // Predicated region
    $region6: #{tpu_custom_call.1} parent=1 // pred_check
      _
    $region7: #{tpu_custom_call.1} parent=1 // pred_check_branch
      %23 = sbr.rel (0) target = $region9
    $region8: #{tpu_custom_call.1} parent=1 // pred_region
      _
    $region9: #{tpu_custom_call.1} parent=1 // pred_fallthru
      _
    // Predicated region
    $region10: #{tpu_custom_call.1} parent=1 // pred_check
      _
    $region11: #{tpu_custom_call.1} parent=1 // pred_check_branch
      %25 = sbr.rel (0) target = $region13
    $region12: #{tpu_custom_call.1} parent=1 // pred_region
      _
    $region13: #{tpu_custom_call.1} parent=1 // pred_fallthru
      _
    // Predicated region
    $region14: #{tpu_custom_call.1} parent=1 // pred_check
      _
    $region15: #{tpu_custom_call.1} parent=1 // pred_check_branch
      %27 = sbr.rel (0) target = $region17
    $region16: #{tpu_custom_call.1} parent=1 // pred_region
      %28 = dma.done [#allocation3], 256
    $region17: #{tpu_custom_call.1} parent=1 // pred_fallthru
      _
    %v29 = vld [vmem:[#allocation2] sm:$0xff]
    %v30 = vld [vmem:[#allocation2 + $0x8] sm:$0xff]
    %v33 = vcombine.high %v29, %v29
    %v34 = vcombine.high %v30, %v30
    %vm37 = vcmask 1043456
    %v38 = vsel %vm37, %v29, 0.0
    %v39 = vsel %vm37, %v33, 0.0
    %v40 = vadd.f32 %v38, %v39
    %41 = vadd.xlane.f32.xlu0 %v40
    %v42 = vpop.xlane.xlu0 %41
    %v43 = vsel %vm37, %v30, 0.0
    %v44 = vsel %vm37, %v34, 0.0
    %v45 = vadd.f32 %v43, %v44
    %46 = vadd.xlane.f32.xlu0 %v45
    %v47 = vpop.xlane.xlu0 %46
    %v48 = vsel %vm37, %v42, 0.0
    %v49 = vsel %vm37, %v47, 0.0
    %v50 = vadd.f32 %v48, %v49
    %v51 = vmul.f32 %v50, 0.001953125
    %v54 = vunpack.c.l.s4 839922192
    %v55 = vunpack.c.0.s8 %v54
    %v56 = vlaneseq
    %v57 = vshrl.u32 %v56, 7
    %v58 = vsub.s32 %v55, %v57
    %v59 = vrot.slane %v51, %v58
    %v61 = vsub.f32 %v29, %v59
    %v62 = vsub.f32 %v30, %v59
    %v63 = vmul.f32 %v61, %v61
    %v64 = vmul.f32 %v62, %v62
    %v67 = vcombine.high %v63, %v63
    %v68 = vcombine.high %v64, %v64
    %v71 = vsel %vm37, %v63, 0.0
    %v72 = vsel %vm37, %v67, 0.0
    %v73 = vadd.f32 %v71, %v72
    %74 = vadd.xlane.f32.xlu0 %v73
    %v75 = vpop.xlane.xlu0 %74
    %v76 = vsel %vm37, %v64, 0.0
    %v77 = vsel %vm37, %v68, 0.0
    %v78 = vadd.f32 %v76, %v77
    %79 = vadd.xlane.f32.xlu0 %v78
    %v80 = vpop.xlane.xlu0 %79
    %v81 = vsel %vm37, %v75, 0.0
    %v82 = vsel %vm37, %v80, 0.0
    %v83 = vadd.f32 %v81, %v82
    %v84 = vmul.f32 %v83, 0.001953125
    %v85 = vld [vmem:[%s1] sm:$0xf]
    %v86 = vadd.f32 %v84, 1e-05
    %v87 = vrsqrt.pop %v86
    %v88 = vmul.f32 %v85, %v87
    %v89 = vld [vmem:[%s2] sm:$0xf]
    %91 = vset.pattern.permute.xlu0 0
    %92 = vperm.xlu0 %91, %v88
    %v93 = vpop.permute.xlu0 %92
    %v95 = vunpack.c.l.s4 839922192
    %v96 = vunpack.c.0.s8 %v95
    %v97 = vlaneseq
    %v98 = vshrl.u32 %v97, 7
    %v99 = vsub.s32 %v96, %v98
    %v100 = vrot.slane %v93, %v99
    %v102 = vmul.f32 %v61, %v100
    %v103 = vmul.f32 %v62, %v100
    %105 = vset.pattern.permute.xlu0 0
    %106 = vperm.xlu0 %105, %v89
    %v107 = vpop.permute.xlu0 %106
    %v109 = vunpack.c.l.s4 839922192
    %v110 = vunpack.c.0.s8 %v109
    %v111 = vlaneseq
    %v112 = vshrl.u32 %v111, 7
    %v113 = vsub.s32 %v110, %v112
    %v114 = vrot.slane %v107, %v113
    %v116 = vadd.f32 %v102, %v114
    %v117 = vadd.f32 %v103, %v114
    %118 = vst [vmem:[#allocation5] sm:$0xff] %v116
    %119 = vst [vmem:[#allocation5 + $0x8] sm:$0xff] %v117
    // Predicated region
    $region18: #{tpu_custom_call.1} parent=1 // pred_check
      _
    $region19: #{tpu_custom_call.1} parent=1 // pred_check_branch
      %121 = sbr.rel (0) target = $region21
    $region20: #{tpu_custom_call.1} parent=1 // pred_region
      %s123 = ssub.s32 256, 256
      %124 = vsyncadd [#allocation4], %s123
      %s125 = sshll.u32 [#allocation5], 4
      %s126 = int_to_ptr.vmem [resolvable:$true] %s125
      %131 = dma.vmem_to_hbm [thread:$0]  %s126, 256, %s3, [#allocation4], 128, 128, 8
    $region21: #{tpu_custom_call.1} parent=1 // pred_fallthru
      _
    // Predicated region
    $region22: #{tpu_custom_call.1} parent=1 // pred_check
      _
    $region23: #{tpu_custom_call.1} parent=1 // pred_check_branch
      %133 = sbr.rel (0) target = $region25
    $region24: #{tpu_custom_call.1} parent=1 // pred_region
      %134 = dma.done [#allocation4], 256
    $region25: #{tpu_custom_call.1} parent=1 // pred_fallthru
      _
    %135 = vsyncpa [#allocation3], 1
    %136 = vsyncpa [#allocation4], 1

</llo_original>
